<compile_context>
chip_gen: v6e
topology: v6e:2x2x1
jax: 0.10.0
libtpu: 0.0.40
codegen_flags: <defaults>
</compile_context>

<pallas_src>
import functools

import numpy as np

import jax
import jax.numpy as jnp
from jax import lax
from jax.experimental import pallas as pl
from jax.experimental.pallas import tpu as pltpu

EPS = 1e-5


# ----------------------------------------------------------------------------
# Fused kernel: conv1 -> bn1 -> relu -> conv2 -> bn2 -> +x -> relu
# ----------------------------------------------------------------------------
def _fused_residual_kernel(x_ref, w1_ref, w2_ref, mask_ref, bn_ref, out_ref,
                           *, n, h, w, matmul_dtype):
    """x_ref/out_ref : (C, N*H*W) f32 — channels on sublanes, lanes dense.
    w1_ref/w2_ref : (Cout, 9*Cin) in `matmul_dtype`; column = tap*Cin + cin.
    mask_ref      : (9, N*H*W) f32 {0,1} validity of each 3x3 tap (padding=1).
    bn_ref        : (C, 4) f32 columns = [gamma1, beta1, gamma2, beta2].
    """
    p = h * w
    np_ = n * p
    inv_np = 1.0 / float(np_)

    x = x_ref[...]                                   # (Cin, NP) f32
    masks = mask_ref[...]                            # (9, NP)  f32
    bn = bn_ref[...]                                 # (C, 4)   f32

    # Static flat-lane offset of each 3x3 tap (lanes ordered (n, h, w)).
    deltas = tuple((kh - 1) * w + (kw - 1) for kh in range(3) for kw in range(3))

    def stack_taps(act):
        # Build the (9*Cin, NP) stacked conv operand: for tap t, lane l holds
        # the input pixel at (h+dh, w+dw), zeroed where the tap falls in the
        # implicit zero padding (masks precomputed on host).  Static shifts
        # via jnp.roll (slice+concat) keep this portable; cross-image /
        # wrap-around pulls are exactly the masked-out positions.
        pieces = []
        for t, delta in enumerate(deltas):
            if delta == 0:
                pieces.append(act)                   # center tap: mask is all-ones
            else:
                shifted = jnp.roll(act, -delta, axis=1)
                pieces.append(shifted * masks[t:t + 1, :])
        # Cast once to the MXU dtype; accumulation stays f32 in the dot below.
        return jnp.concatenate(pieces, axis=0).astype(matmul_dtype)

    def batchnorm(acc, gamma, beta):
        # Training-mode BN over (N, H, W) == lane axis; biased variance,
        # two-pass (cancellation-safe), f32 throughout.
        mean = jnp.sum(acc, axis=-1, keepdims=True) * inv_np
        centered = acc - mean
        var = jnp.sum(centered * centered, axis=-1, keepdims=True) * inv_np
        return centered * lax.rsqrt(var + EPS) * gamma + beta

    g1, b1 = bn[:, 0:1], bn[:, 1:2]
    g2, b2 = bn[:, 2:3], bn[:, 3:4]

    # conv1 -> bn1 -> relu   (single stacked contraction, f32 accumulation)
    y = jnp.dot(w1_ref[...], stack_taps(x), preferred_element_type=jnp.float32)
    y = jnp.maximum(batchnorm(y, g1, b1), 0.0)

    # conv2 -> bn2 -> +x -> relu
    y = jnp.dot(w2_ref[...], stack_taps(y), preferred_element_type=jnp.float32)
    y = batchnorm(y, g2, b2) + x                     # identity residual (f32)
    out_ref[...] = jnp.maximum(y, 0.0).astype(out_ref.dtype)


# ----------------------------------------------------------------------------
# Host-side helpers
# ----------------------------------------------------------------------------
def _tap_masks(n, h, w):
    """(9, N*H*W) f32 {0,1}: validity of each 3x3 tap for padding=1."""
    hh, ww = np.meshgrid(np.arange(h), np.arange(w), indexing="ij")
    rows = []
    for kh in range(3):
        for kw in range(3):
            dh, dw = kh - 1, kw - 1
            valid = ((hh + dh >= 0) & (hh + dh < h) &
                     (ww + dw >= 0) & (ww + dw < w))
            rows.append(np.tile(valid.reshape(-1), n))     # lanes: (n, h, w)
    return jnp.asarray(np.stack(rows, axis=0).astype(np.float32))


def _stack_weights(w_oihw, dtype):
    """OIHW -> (Cout, 9*Cin); column index = (kh*3 + kw)*Cin + cin."""
    o, i = w_oihw.shape[0], w_oihw.shape[1]
    return jnp.transpose(w_oihw, (0, 2, 3, 1)).reshape(o, 9 * i).astype(dtype)


def _full_spec(shape):
    rank = len(shape)
    return pl.BlockSpec(shape, lambda i, _r=rank: (0,) * _r)


# ----------------------------------------------------------------------------
# pallas_call wrapper
# ----------------------------------------------------------------------------
def residual_block_forward(x_nchw, params, *, matmul_dtype=jnp.bfloat16):
    """Forward of ResidualBlock(C, C, stride=1, downsample=None).

    `matmul_dtype` is the MXU operand dtype for the two convolutions
    (bf16 default per the perf review; f32 accumulation either way).
    """
    x = x_nchw.astype(jnp.float32)
    N, C, H, W = x.shape
    NP = N * H * W

    # NCHW -> (C, N*H*W): pure layout glue, done once outside the kernel.
    x2d = jnp.transpose(x, (1, 0, 2, 3)).reshape(C, NP)

    w1 = _stack_weights(params["conv1_w"], matmul_dtype)   # (C, 9*C)
    w2 = _stack_weights(params["conv2_w"], matmul_dtype)   # (C, 9*C)
    masks = _tap_masks(N, H, W)                            # (9, NP)
    bn = jnp.stack([params["bn1_gamma"], params["bn1_beta"],
                    params["bn2_gamma"], params["bn2_beta"]],
                   axis=1).astype(jnp.float32)             # (C, 4)

    kernel = functools.partial(_fused_residual_kernel,
                               n=N, h=H, w=W, matmul_dtype=matmul_dtype)

    out2d = pl.pallas_call(
        kernel,
        out_shape=jax.ShapeDtypeStruct((C, NP), jnp.float32),
        grid=(1,),
        in_specs=[_full_spec(x2d.shape), _full_spec(w1.shape),
                  _full_spec(w2.shape), _full_spec(masks.shape),
                  _full_spec(bn.shape)],
        out_specs=_full_spec((C, NP)),
        compiler_params=pltpu.CompilerParams(dimension_semantics=("arbitrary",)),
    )(x2d, w1, w2, masks, bn)

    # (C, N*H*W) -> NCHW to match the PyTorch output convention.
    return jnp.transpose(out2d.reshape(C, N, H, W), (1, 0, 2, 3))

    # TODO(synk): `downsample` is an arbitrary user-supplied module (None by
    # default), so only the identity residual path is implemented.  BatchNorm
    # running_mean/var buffer updates are not modeled (forward value only).


# ----------------------------------------------------------------------------
# Pure-JAX reference (module semantics; conv_dtype controls operand rounding)
# ----------------------------------------------------------------------------
def _ref_forward(x_nchw, params, conv_dtype=jnp.float32):
    def conv(a, w):
        return lax.conv_general_dilated(
            a.astype(conv_dtype), w.astype(conv_dtype),
            window_strides=(1, 1), padding=((1, 1), (1, 1)),
            dimension_numbers=("NCHW", "OIHW", "NCHW"),
            preferred_element_type=jnp.float32)

    def bn(a, g, b):
        mean = jnp.mean(a, axis=(0, 2, 3), keepdims=True)
        var = jnp.mean((a - mean) ** 2, axis=(0, 2, 3), keepdims=True)
        return ((a - mean) * lax.rsqrt(var + EPS) * g.reshape(1, -1, 1, 1)
                + b.reshape(1, -1, 1, 1))

    out = jax.nn.relu(bn(conv(x_nchw, params["conv1_w"]),
                         params["bn1_gamma"], params["bn1_beta"]))
    out = bn(conv(out, params["conv2_w"]),
             params["bn2_gamma"], params["bn2_beta"])
    return jax.nn.relu(out + x_nchw)


# ----------------------------------------------------------------------------
if __name__ == "__main__":
    key = jax.random.PRNGKey(0)
    k1, k2, kx = jax.random.split(key, 3)

    N, C, H, W = 2, 4, 16, 16  # batch=2, channels=4, spatial=16x16

    params = {
        "conv1_w": 0.1 * jax.random.normal(k1, (C, C, 3, 3), jnp.float32),
        "conv2_w": 0.1 * jax.random.normal(k2, (C, C, 3, 3), jnp.float32),
        "bn1_gamma": jnp.ones((C,), jnp.float32),
        "bn1_beta": jnp.zeros((C,), jnp.float32),
        "bn2_gamma": jnp.ones((C,), jnp.float32),
        "bn2_beta": jnp.zeros((C,), jnp.float32),
    }

    x = jax.random.normal(kx, (N, C, H, W), jnp.float32)

    out = jax.block_until_ready(residual_block_forward(x, params))
    assert out.shape == (N, C, H, W), out.shape

    # Reference with matched conv-operand precision (bf16 operands, f32
    # accumulation, f32 BN/elementwise) — isolates kernel correctness from the
    # deliberate bf16-MXU precision choice.
    ref = jax.block_until_ready(_ref_forward(x, params, conv_dtype=jnp.bfloat16))
    err = float(jnp.max(jnp.abs(out - ref)))
    assert jnp.allclose(out, ref, atol=2e-2, rtol=2e-2), err

    print("KERNEL_OK")
</pallas_src>

<mosaic_0001>
module attributes {stable_mosaic.version = 11 : i64} {
  func.func @_fused_residual_kernel(%arg0: i32, %arg1: memref<4x512xf32, #tpu.memory_space<vmem>>, %arg2: memref<4x36xbf16, #tpu.memory_space<vmem>>, %arg3: memref<4x36xbf16, #tpu.memory_space<vmem>>, %arg4: memref<9x512xf32, #tpu.memory_space<vmem>>, %arg5: memref<4x4xf32, #tpu.memory_space<vmem>>, %arg6: memref<4x512xf32, #tpu.memory_space<vmem>>) attributes {dimension_semantics = [#tpu.dimension_semantics<arbitrary>], iteration_bounds = array<i64: 1>, scalar_prefetch = 0 : i64, scratch_operands = 0 : i64, tpu.core_type = #tpu.core_type<tc>, window_params = [{pipeline_mode = #tpu.pipeline_mode<synchronous>, transform_indices = @transform_0, window_bounds = array<i64: 4, 512>}, {pipeline_mode = #tpu.pipeline_mode<synchronous>, transform_indices = @transform_1, window_bounds = array<i64: 4, 36>}, {pipeline_mode = #tpu.pipeline_mode<synchronous>, transform_indices = @transform_2, window_bounds = array<i64: 4, 36>}, {pipeline_mode = #tpu.pipeline_mode<synchronous>, transform_indices = @transform_3, window_bounds = array<i64: 9, 512>}, {pipeline_mode = #tpu.pipeline_mode<synchronous>, transform_indices = @transform_4, window_bounds = array<i64: 4, 4>}, {pipeline_mode = #tpu.pipeline_mode<synchronous>, transform_indices = @transform_5, window_bounds = array<i64: 4, 512>}]} {
    %c0 = arith.constant 0 : index
    %c0_0 = arith.constant 0 : index
    %0 = vector.load %arg1[%c0, %c0_0] : memref<4x512xf32, #tpu.memory_space<vmem>>, vector<4x512xf32>
    %c0_1 = arith.constant 0 : index
    %c0_2 = arith.constant 0 : index
    %1 = vector.load %arg4[%c0_1, %c0_2] : memref<9x512xf32, #tpu.memory_space<vmem>>, vector<9x512xf32>
    %c0_3 = arith.constant 0 : index
    %c0_4 = arith.constant 0 : index
    %2 = vector.load %arg5[%c0_3, %c0_4] : memref<4x4xf32, #tpu.memory_space<vmem>>, vector<4x4xf32>
    %3 = vector.extract_strided_slice %2 {offsets = [0, 0], sizes = [4, 1], strides = [1, 1]} : vector<4x4xf32> to vector<4x1xf32>
    %4 = vector.extract_strided_slice %2 {offsets = [0, 1], sizes = [4, 1], strides = [1, 1]} : vector<4x4xf32> to vector<4x1xf32>
    %5 = vector.extract_strided_slice %2 {offsets = [0, 2], sizes = [4, 1], strides = [1, 1]} : vector<4x4xf32> to vector<4x1xf32>
    %6 = vector.extract_strided_slice %2 {offsets = [0, 3], sizes = [4, 1], strides = [1, 1]} : vector<4x4xf32> to vector<4x1xf32>
    %c0_5 = arith.constant 0 : index
    %c0_6 = arith.constant 0 : index
    %7 = vector.load %arg2[%c0_5, %c0_6] : memref<4x36xbf16, #tpu.memory_space<vmem>>, vector<4x36xbf16>
    %8 = vector.extract_strided_slice %0 {offsets = [0, 495], sizes = [4, 17], strides = [1, 1]} : vector<4x512xf32> to vector<4x17xf32>
    %9 = vector.extract_strided_slice %0 {offsets = [0, 0], sizes = [4, 495], strides = [1, 1]} : vector<4x512xf32> to vector<4x495xf32>
    %10 = tpu.concatenate %8, %9 in 1 : vector<4x17xf32>, vector<4x495xf32> -> vector<4x512xf32>
    %11 = vector.extract_strided_slice %1 {offsets = [0, 0], sizes = [1, 512], strides = [1, 1]} : vector<9x512xf32> to vector<1x512xf32>
    %12 = vector.broadcast %11 : vector<1x512xf32> to vector<4x512xf32>
    %13 = arith.mulf %10, %12 : vector<4x512xf32>
    %14 = vector.extract_strided_slice %0 {offsets = [0, 496], sizes = [4, 16], strides = [1, 1]} : vector<4x512xf32> to vector<4x16xf32>
    %15 = vector.extract_strided_slice %0 {offsets = [0, 0], sizes = [4, 496], strides = [1, 1]} : vector<4x512xf32> to vector<4x496xf32>
    %16 = tpu.concatenate %14, %15 in 1 : vector<4x16xf32>, vector<4x496xf32> -> vector<4x512xf32>
    %17 = vector.extract_strided_slice %1 {offsets = [1, 0], sizes = [1, 512], strides = [1, 1]} : vector<9x512xf32> to vector<1x512xf32>
    %18 = vector.broadcast %17 : vector<1x512xf32> to vector<4x512xf32>
    %19 = arith.mulf %16, %18 : vector<4x512xf32>
    %20 = vector.extract_strided_slice %0 {offsets = [0, 497], sizes = [4, 15], strides = [1, 1]} : vector<4x512xf32> to vector<4x15xf32>
    %21 = vector.extract_strided_slice %0 {offsets = [0, 0], sizes = [4, 497], strides = [1, 1]} : vector<4x512xf32> to vector<4x497xf32>
    %22 = tpu.concatenate %20, %21 in 1 : vector<4x15xf32>, vector<4x497xf32> -> vector<4x512xf32>
    %23 = vector.extract_strided_slice %1 {offsets = [2, 0], sizes = [1, 512], strides = [1, 1]} : vector<9x512xf32> to vector<1x512xf32>
    %24 = vector.broadcast %23 : vector<1x512xf32> to vector<4x512xf32>
    %25 = arith.mulf %22, %24 : vector<4x512xf32>
    %26 = vector.extract_strided_slice %0 {offsets = [0, 511], sizes = [4, 1], strides = [1, 1]} : vector<4x512xf32> to vector<4x1xf32>
    %27 = vector.extract_strided_slice %0 {offsets = [0, 0], sizes = [4, 511], strides = [1, 1]} : vector<4x512xf32> to vector<4x511xf32>
    %28 = tpu.concatenate %26, %27 in 1 : vector<4x1xf32>, vector<4x511xf32> -> vector<4x512xf32>
    %29 = vector.extract_strided_slice %1 {offsets = [3, 0], sizes = [1, 512], strides = [1, 1]} : vector<9x512xf32> to vector<1x512xf32>
    %30 = vector.broadcast %29 : vector<1x512xf32> to vector<4x512xf32>
    %31 = arith.mulf %28, %30 : vector<4x512xf32>
    %32 = vector.extract_strided_slice %0 {offsets = [0, 1], sizes = [4, 511], strides = [1, 1]} : vector<4x512xf32> to vector<4x511xf32>
    %33 = vector.extract_strided_slice %0 {offsets = [0, 0], sizes = [4, 1], strides = [1, 1]} : vector<4x512xf32> to vector<4x1xf32>
    %34 = tpu.concatenate %32, %33 in 1 : vector<4x511xf32>, vector<4x1xf32> -> vector<4x512xf32>
    %35 = vector.extract_strided_slice %1 {offsets = [5, 0], sizes = [1, 512], strides = [1, 1]} : vector<9x512xf32> to vector<1x512xf32>
    %36 = vector.broadcast %35 : vector<1x512xf32> to vector<4x512xf32>
    %37 = arith.mulf %34, %36 : vector<4x512xf32>
    %38 = vector.extract_strided_slice %0 {offsets = [0, 15], sizes = [4, 497], strides = [1, 1]} : vector<4x512xf32> to vector<4x497xf32>
    %39 = vector.extract_strided_slice %0 {offsets = [0, 0], sizes = [4, 15], strides = [1, 1]} : vector<4x512xf32> to vector<4x15xf32>
    %40 = tpu.concatenate %38, %39 in 1 : vector<4x497xf32>, vector<4x15xf32> -> vector<4x512xf32>
    %41 = vector.extract_strided_slice %1 {offsets = [6, 0], sizes = [1, 512], strides = [1, 1]} : vector<9x512xf32> to vector<1x512xf32>
    %42 = vector.broadcast %41 : vector<1x512xf32> to vector<4x512xf32>
    %43 = arith.mulf %40, %42 : vector<4x512xf32>
    %44 = vector.extract_strided_slice %0 {offsets = [0, 16], sizes = [4, 496], strides = [1, 1]} : vector<4x512xf32> to vector<4x496xf32>
    %45 = vector.extract_strided_slice %0 {offsets = [0, 0], sizes = [4, 16], strides = [1, 1]} : vector<4x512xf32> to vector<4x16xf32>
    %46 = tpu.concatenate %44, %45 in 1 : vector<4x496xf32>, vector<4x16xf32> -> vector<4x512xf32>
    %47 = vector.extract_strided_slice %1 {offsets = [7, 0], sizes = [1, 512], strides = [1, 1]} : vector<9x512xf32> to vector<1x512xf32>
    %48 = vector.broadcast %47 : vector<1x512xf32> to vector<4x512xf32>
    %49 = arith.mulf %46, %48 : vector<4x512xf32>
    %50 = vector.extract_strided_slice %0 {offsets = [0, 17], sizes = [4, 495], strides = [1, 1]} : vector<4x512xf32> to vector<4x495xf32>
    %51 = vector.extract_strided_slice %0 {offsets = [0, 0], sizes = [4, 17], strides = [1, 1]} : vector<4x512xf32> to vector<4x17xf32>
    %52 = tpu.concatenate %50, %51 in 1 : vector<4x495xf32>, vector<4x17xf32> -> vector<4x512xf32>
    %53 = vector.extract_strided_slice %1 {offsets = [8, 0], sizes = [1, 512], strides = [1, 1]} : vector<9x512xf32> to vector<1x512xf32>
    %54 = vector.broadcast %53 : vector<1x512xf32> to vector<4x512xf32>
    %55 = arith.mulf %52, %54 : vector<4x512xf32>
    %56 = tpu.concatenate %13, %19, %25, %31, %0, %37, %43, %49, %55 in 0 : vector<4x512xf32>, vector<4x512xf32>, vector<4x512xf32>, vector<4x512xf32>, vector<4x512xf32>, vector<4x512xf32>, vector<4x512xf32>, vector<4x512xf32>, vector<4x512xf32> -> vector<36x512xf32>
    %57 = arith.truncf %56 : vector<36x512xf32> to vector<36x512xbf16>
    %cst = arith.constant dense<0.000000e+00> : vector<4x512xf32>
    %58 = tpu.matmul %7, %57, %cst {dimension_numbers = #tpu.dot_dimension_numbers<[1], [0], [0], [1], [0, 0, 1, 1], [], []>} : vector<4x36xbf16>, vector<36x512xbf16>, vector<4x512xf32> -> vector<4x512xf32>
    %cst_7 = arith.constant dense<0.000000e+00> : vector<4xf32>
    %59 = vector.multi_reduction <add>, %58, %cst_7 [1] : vector<4x512xf32> to vector<4xf32>
    %60 = vector.shape_cast %59 : vector<4xf32> to vector<4x1xf32>
    %cst_8 = arith.constant 0.001953125 : f32
    %61 = vector.broadcast %cst_8 : f32 to vector<4x1xf32>
    %62 = arith.mulf %60, %61 : vector<4x1xf32>
    %63 = vector.broadcast %62 : vector<4x1xf32> to vector<4x512xf32>
    %64 = arith.subf %58, %63 : vector<4x512xf32>
    %65 = arith.mulf %64, %64 : vector<4x512xf32>
    %cst_9 = arith.constant dense<0.000000e+00> : vector<4xf32>
    %66 = vector.multi_reduction <add>, %65, %cst_9 [1] : vector<4x512xf32> to vector<4xf32>
    %67 = vector.shape_cast %66 : vector<4xf32> to vector<4x1xf32>
    %cst_10 = arith.constant 0.001953125 : f32
    %68 = vector.broadcast %cst_10 : f32 to vector<4x1xf32>
    %69 = arith.mulf %67, %68 : vector<4x1xf32>
    %cst_11 = arith.constant 9.99999974E-6 : f32
    %70 = vector.broadcast %cst_11 : f32 to vector<4x1xf32>
    %71 = arith.addf %69, %70 : vector<4x1xf32>
    %72 = math.rsqrt %71 : vector<4x1xf32>
    %73 = vector.broadcast %72 : vector<4x1xf32> to vector<4x512xf32>
    %74 = arith.mulf %64, %73 : vector<4x512xf32>
    %75 = vector.broadcast %3 : vector<4x1xf32> to vector<4x512xf32>
    %76 = arith.mulf %74, %75 : vector<4x512xf32>
    %77 = vector.broadcast %4 : vector<4x1xf32> to vector<4x512xf32>
    %78 = arith.addf %76, %77 : vector<4x512xf32>
    %cst_12 = arith.constant 0.000000e+00 : f32
    %79 = vector.broadcast %cst_12 : f32 to vector<4x512xf32>
    %80 = arith.maximumf %78, %79 : vector<4x512xf32>
    %c0_13 = arith.constant 0 : index
    %c0_14 = arith.constant 0 : index
    %81 = vector.load %arg3[%c0_13, %c0_14] : memref<4x36xbf16, #tpu.memory_space<vmem>>, vector<4x36xbf16>
    %82 = vector.extract_strided_slice %80 {offsets = [0, 495], sizes = [4, 17], strides = [1, 1]} : vector<4x512xf32> to vector<4x17xf32>
    %83 = vector.extract_strided_slice %80 {offsets = [0, 0], sizes = [4, 495], strides = [1, 1]} : vector<4x512xf32> to vector<4x495xf32>
    %84 = tpu.concatenate %82, %83 in 1 : vector<4x17xf32>, vector<4x495xf32> -> vector<4x512xf32>
    %85 = vector.extract_strided_slice %1 {offsets = [0, 0], sizes = [1, 512], strides = [1, 1]} : vector<9x512xf32> to vector<1x512xf32>
    %86 = vector.broadcast %85 : vector<1x512xf32> to vector<4x512xf32>
    %87 = arith.mulf %84, %86 : vector<4x512xf32>
    %88 = vector.extract_strided_slice %80 {offsets = [0, 496], sizes = [4, 16], strides = [1, 1]} : vector<4x512xf32> to vector<4x16xf32>
    %89 = vector.extract_strided_slice %80 {offsets = [0, 0], sizes = [4, 496], strides = [1, 1]} : vector<4x512xf32> to vector<4x496xf32>
    %90 = tpu.concatenate %88, %89 in 1 : vector<4x16xf32>, vector<4x496xf32> -> vector<4x512xf32>
    %91 = vector.extract_strided_slice %1 {offsets = [1, 0], sizes = [1, 512], strides = [1, 1]} : vector<9x512xf32> to vector<1x512xf32>
    %92 = vector.broadcast %91 : vector<1x512xf32> to vector<4x512xf32>
    %93 = arith.mulf %90, %92 : vector<4x512xf32>
    %94 = vector.extract_strided_slice %80 {offsets = [0, 497], sizes = [4, 15], strides = [1, 1]} : vector<4x512xf32> to vector<4x15xf32>
    %95 = vector.extract_strided_slice %80 {offsets = [0, 0], sizes = [4, 497], strides = [1, 1]} : vector<4x512xf32> to vector<4x497xf32>
    %96 = tpu.concatenate %94, %95 in 1 : vector<4x15xf32>, vector<4x497xf32> -> vector<4x512xf32>
    %97 = vector.extract_strided_slice %1 {offsets = [2, 0], sizes = [1, 512], strides = [1, 1]} : vector<9x512xf32> to vector<1x512xf32>
    %98 = vector.broadcast %97 : vector<1x512xf32> to vector<4x512xf32>
    %99 = arith.mulf %96, %98 : vector<4x512xf32>
    %100 = vector.extract_strided_slice %80 {offsets = [0, 511], sizes = [4, 1], strides = [1, 1]} : vector<4x512xf32> to vector<4x1xf32>
    %101 = vector.extract_strided_slice %80 {offsets = [0, 0], sizes = [4, 511], strides = [1, 1]} : vector<4x512xf32> to vector<4x511xf32>
    %102 = tpu.concatenate %100, %101 in 1 : vector<4x1xf32>, vector<4x511xf32> -> vector<4x512xf32>
    %103 = vector.extract_strided_slice %1 {offsets = [3, 0], sizes = [1, 512], strides = [1, 1]} : vector<9x512xf32> to vector<1x512xf32>
    %104 = vector.broadcast %103 : vector<1x512xf32> to vector<4x512xf32>
    %105 = arith.mulf %102, %104 : vector<4x512xf32>
    %106 = vector.extract_strided_slice %80 {offsets = [0, 1], sizes = [4, 511], strides = [1, 1]} : vector<4x512xf32> to vector<4x511xf32>
    %107 = vector.extract_strided_slice %80 {offsets = [0, 0], sizes = [4, 1], strides = [1, 1]} : vector<4x512xf32> to vector<4x1xf32>
    %108 = tpu.concatenate %106, %107 in 1 : vector<4x511xf32>, vector<4x1xf32> -> vector<4x512xf32>
    %109 = vector.extract_strided_slice %1 {offsets = [5, 0], sizes = [1, 512], strides = [1, 1]} : vector<9x512xf32> to vector<1x512xf32>
    %110 = vector.broadcast %109 : vector<1x512xf32> to vector<4x512xf32>
    %111 = arith.mulf %108, %110 : vector<4x512xf32>
    %112 = vector.extract_strided_slice %80 {offsets = [0, 15], sizes = [4, 497], strides = [1, 1]} : vector<4x512xf32> to vector<4x497xf32>
    %113 = vector.extract_strided_slice %80 {offsets = [0, 0], sizes = [4, 15], strides = [1, 1]} : vector<4x512xf32> to vector<4x15xf32>
    %114 = tpu.concatenate %112, %113 in 1 : vector<4x497xf32>, vector<4x15xf32> -> vector<4x512xf32>
    %115 = vector.extract_strided_slice %1 {offsets = [6, 0], sizes = [1, 512], strides = [1, 1]} : vector<9x512xf32> to vector<1x512xf32>
    %116 = vector.broadcast %115 : vector<1x512xf32> to vector<4x512xf32>
    %117 = arith.mulf %114, %116 : vector<4x512xf32>
    %118 = vector.extract_strided_slice %80 {offsets = [0, 16], sizes = [4, 496], strides = [1, 1]} : vector<4x512xf32> to vector<4x496xf32>
    %119 = vector.extract_strided_slice %80 {offsets = [0, 0], sizes = [4, 16], strides = [1, 1]} : vector<4x512xf32> to vector<4x16xf32>
    %120 = tpu.concatenate %118, %119 in 1 : vector<4x496xf32>, vector<4x16xf32> -> vector<4x512xf32>
    %121 = vector.extract_strided_slice %1 {offsets = [7, 0], sizes = [1, 512], strides = [1, 1]} : vector<9x512xf32> to vector<1x512xf32>
    %122 = vector.broadcast %121 : vector<1x512xf32> to vector<4x512xf32>
    %123 = arith.mulf %120, %122 : vector<4x512xf32>
    %124 = vector.extract_strided_slice %80 {offsets = [0, 17], sizes = [4, 495], strides = [1, 1]} : vector<4x512xf32> to vector<4x495xf32>
    %125 = vector.extract_strided_slice %80 {offsets = [0, 0], sizes = [4, 17], strides = [1, 1]} : vector<4x512xf32> to vector<4x17xf32>
    %126 = tpu.concatenate %124, %125 in 1 : vector<4x495xf32>, vector<4x17xf32> -> vector<4x512xf32>
    %127 = vector.extract_strided_slice %1 {offsets = [8, 0], sizes = [1, 512], strides = [1, 1]} : vector<9x512xf32> to vector<1x512xf32>
    %128 = vector.broadcast %127 : vector<1x512xf32> to vector<4x512xf32>
    %129 = arith.mulf %126, %128 : vector<4x512xf32>
    %130 = tpu.concatenate %87, %93, %99, %105, %80, %111, %117, %123, %129 in 0 : vector<4x512xf32>, vector<4x512xf32>, vector<4x512xf32>, vector<4x512xf32>, vector<4x512xf32>, vector<4x512xf32>, vector<4x512xf32>, vector<4x512xf32>, vector<4x512xf32> -> vector<36x512xf32>
    %131 = arith.truncf %130 : vector<36x512xf32> to vector<36x512xbf16>
    %cst_15 = arith.constant dense<0.000000e+00> : vector<4x512xf32>
    %132 = tpu.matmul %81, %131, %cst_15 {dimension_numbers = #tpu.dot_dimension_numbers<[1], [0], [0], [1], [0, 0, 1, 1], [], []>} : vector<4x36xbf16>, vector<36x512xbf16>, vector<4x512xf32> -> vector<4x512xf32>
    %cst_16 = arith.constant dense<0.000000e+00> : vector<4xf32>
    %133 = vector.multi_reduction <add>, %132, %cst_16 [1] : vector<4x512xf32> to vector<4xf32>
    %134 = vector.shape_cast %133 : vector<4xf32> to vector<4x1xf32>
    %cst_17 = arith.constant 0.001953125 : f32
    %135 = vector.broadcast %cst_17 : f32 to vector<4x1xf32>
    %136 = arith.mulf %134, %135 : vector<4x1xf32>
    %137 = vector.broadcast %136 : vector<4x1xf32> to vector<4x512xf32>
    %138 = arith.subf %132, %137 : vector<4x512xf32>
    %139 = arith.mulf %138, %138 : vector<4x512xf32>
    %cst_18 = arith.constant dense<0.000000e+00> : vector<4xf32>
    %140 = vector.multi_reduction <add>, %139, %cst_18 [1] : vector<4x512xf32> to vector<4xf32>
    %141 = vector.shape_cast %140 : vector<4xf32> to vector<4x1xf32>
    %cst_19 = arith.constant 0.001953125 : f32
    %142 = vector.broadcast %cst_19 : f32 to vector<4x1xf32>
    %143 = arith.mulf %141, %142 : vector<4x1xf32>
    %cst_20 = arith.constant 9.99999974E-6 : f32
    %144 = vector.broadcast %cst_20 : f32 to vector<4x1xf32>
    %145 = arith.addf %143, %144 : vector<4x1xf32>
    %146 = math.rsqrt %145 : vector<4x1xf32>
    %147 = vector.broadcast %146 : vector<4x1xf32> to vector<4x512xf32>
    %148 = arith.mulf %138, %147 : vector<4x512xf32>
    %149 = vector.broadcast %5 : vector<4x1xf32> to vector<4x512xf32>
    %150 = arith.mulf %148, %149 : vector<4x512xf32>
    %151 = vector.broadcast %6 : vector<4x1xf32> to vector<4x512xf32>
    %152 = arith.addf %150, %151 : vector<4x512xf32>
    %153 = arith.addf %152, %0 : vector<4x512xf32>
    %cst_21 = arith.constant 0.000000e+00 : f32
    %154 = vector.broadcast %cst_21 : f32 to vector<4x512xf32>
    %155 = arith.maximumf %153, %154 : vector<4x512xf32>
    %c0_22 = arith.constant 0 : index
    %c0_23 = arith.constant 0 : index
    %156 = vector.load %arg6[%c0_22, %c0_23] : memref<4x512xf32, #tpu.memory_space<vmem>>, vector<4x512xf32>
    tpu.vector_store %arg6[%c0_22, %c0_23], %155 {strides = array<i32>} : memref<4x512xf32, #tpu.memory_space<vmem>>, vector<4x512xf32>,
    return
  }
  func.func @transform_0(%arg0: i32) -> (i32, i32) {
    %c0_i32 = arith.constant 0 : i32
    %c0_i32_0 = arith.constant 0 : i32
    %c0_i32_1 = arith.constant 0 : i32
    return %c0_i32, %c0_i32_0 : i32, i32
  }
  func.func @transform_1(%arg0: i32) -> (i32, i32) {
    %c0_i32 = arith.constant 0 : i32
    %c0_i32_0 = arith.constant 0 : i32
    %c0_i32_1 = arith.constant 0 : i32
    return %c0_i32, %c0_i32_0 : i32, i32
  }
  func.func @transform_2(%arg0: i32) -> (i32, i32) {
    %c0_i32 = arith.constant 0 : i32
    %c0_i32_0 = arith.constant 0 : i32
    %c0_i32_1 = arith.constant 0 : i32
    return %c0_i32, %c0_i32_0 : i32, i32
  }
  func.func @transform_3(%arg0: i32) -> (i32, i32) {
    %c0_i32 = arith.constant 0 : i32
    %c0_i32_0 = arith.constant 0 : i32
    %c0_i32_1 = arith.constant 0 : i32
    return %c0_i32, %c0_i32_0 : i32, i32
  }
  func.func @transform_4(%arg0: i32) -> (i32, i32) {
    %c0_i32 = arith.constant 0 : i32
    %c0_i32_0 = arith.constant 0 : i32
    %c0_i32_1 = arith.constant 0 : i32
    return %c0_i32, %c0_i32_0 : i32, i32
  }
  func.func @transform_5(%arg0: i32) -> (i32, i32) {
    %c0_i32 = arith.constant 0 : i32
    %c0_i32_0 = arith.constant 0 : i32
    %c0_i32_1 = arith.constant 0 : i32
    return %c0_i32, %c0_i32_0 : i32, i32
  }
}

</mosaic_0001>

<llo_original>
// kernel: tpu_custom_call.1
$region0: #{tpu_custom_call.1}
  #allocation0 [shape = 'u32[]', space=smem, size = 0x4, offset = 0x4, fixed_abs, tag = 'smem constant byte address 0x4 - core index']
  #allocation1 [shape = 'u32[144,128]{1,0:T(1,128)}', space=vmem, size = 0x12000, scoped, tag = 'internal scratch']
  %s0 = inlined_call_operand.hbm [shape: f32[4,512], index: 0, kind: input, shape index: {}]
  %s1 = inlined_call_operand.hbm [shape: bf16[4,36], index: 1, kind: input, shape index: {}]
  %s2 = inlined_call_operand.vmem [shape: bf16[4,36], index: 2, kind: input, shape index: {}]
  %s3 = inlined_call_operand.hbm [shape: f32[9,512], index: 3, kind: input, shape index: {}]
  %s4 = inlined_call_operand.vmem [shape: f32[4,4], index: 4, kind: input, shape index: {}]
  %s5 = inlined_call_operand.hbm [shape: f32[4,512], index: 5, kind: output, shape index: {}]
  %s6 = sld [smem:[#allocation0]]
  $region42: #{tpu_custom_call.1} parent=0
    _
  %s8 = ssub.s32 1, %s6
  %s9 = scalar_select 0, %s8, %s6
  $region1: #{tpu_custom_call.1} parent=0
    #allocation2 [shape = 'u8[8192]{0}', space=vmem, size = 0x2000, scoped, tag = 'input window, operand 0, single buffered']
    #allocation3 [shape = 's32[1]{0}', space=sflag, size = 0x4, scoped, tag = 'scoped memory for tpu_custom_call.1']
    #allocation4 [shape = 's32[1]{0}', space=sflag, size = 0x4, scoped, tag = 'scoped memory for tpu_custom_call.1']
    #allocation5 [shape = 'u8[1024]{0}', space=vmem, size = 0x400, scoped, tag = 'input window, operand 1, single buffered']
    #allocation6 [shape = 's32[1]{0}', space=sflag, size = 0x4, scoped, tag = 'scoped memory for tpu_custom_call.1']
    #allocation7 [shape = 'u8[32768]{0}', space=vmem, size = 0x8000, scoped, tag = 'input window, operand 3, single buffered']
    #allocation8 [shape = 'u8[8192]{0}', space=vmem, size = 0x2000, scoped, tag = 'output window, operand 0, single buffered']
    %10 = vsyncpa [#allocation3], 0
    %11 = vsyncpa [#allocation6], 0
    %12 = vsyncpa [#allocation4], 0
    // Predicated region
    $region2: #{tpu_custom_call.1} parent=1 // pred_check
      _
    $region3: #{tpu_custom_call.1} parent=1 // pred_check_branch
      %14 = sbr.rel (0) target = $region5
    $region4: #{tpu_custom_call.1} parent=1 // pred_region
      %s16 = ssub.s32 256, 256
      %17 = vsyncadd [#allocation3], %s16
      %s19 = sshll.u32 [#allocation2], 4
      %s20 = int_to_ptr.vmem [resolvable:$true] %s19
      %22 = dma.hbm_to_vmem [thread:$0]  %s0, 256, %s20, [#allocation3]
    $region5: #{tpu_custom_call.1} parent=1 // pred_fallthru
      _
    // Predicated region
    $region6: #{tpu_custom_call.1} parent=1 // pred_check
      _
    $region7: #{tpu_custom_call.1} parent=1 // pred_check_branch
      %24 = sbr.rel (0) target = $region9
    $region8: #{tpu_custom_call.1} parent=1 // pred_region
      %s26 = ssub.s32 32, 32
      %27 = vsyncadd [#allocation6], %s26
      %s29 = sshll.u32 [#allocation5], 4
      %s30 = int_to_ptr.vmem [resolvable:$true] %s29
      %32 = dma.hbm_to_vmem [thread:$0]  %s1, 32, %s30, [#allocation6]
    $region9: #{tpu_custom_call.1} parent=1 // pred_fallthru
      _
    // Predicated region
    $region10: #{tpu_custom_call.1} parent=1 // pred_check
      _
    $region11: #{tpu_custom_call.1} parent=1 // pred_check_branch
      %34 = sbr.rel (0) target = $region13
    $region12: #{tpu_custom_call.1} parent=1 // pred_region
      _
    $region13: #{tpu_custom_call.1} parent=1 // pred_fallthru
      _
    // Predicated region
    $region14: #{tpu_custom_call.1} parent=1 // pred_check
      _
    $region15: #{tpu_custom_call.1} parent=1 // pred_check_branch
      %36 = sbr.rel (0) target = $region17
    $region16: #{tpu_custom_call.1} parent=1 // pred_region
      %s38 = ssub.s32 1024, 1024
      %39 = vsyncadd [#allocation6], %s38
      %s40 = sshll.u32 [#allocation7], 4
      %s41 = int_to_ptr.vmem [resolvable:$true] %s40
      %46 = dma.hbm_to_vmem [thread:$0]  %s3, 1024, %s41, [#allocation6], 512, 512, 32
    $region17: #{tpu_custom_call.1} parent=1 // pred_fallthru
      _
    // Predicated region
    $region18: #{tpu_custom_call.1} parent=1 // pred_check
      _
    $region19: #{tpu_custom_call.1} parent=1 // pred_check_branch
      %48 = sbr.rel (0) target = $region21
    $region20: #{tpu_custom_call.1} parent=1 // pred_region
      _
    $region21: #{tpu_custom_call.1} parent=1 // pred_fallthru
      _
    // Predicated region
    $region22: #{tpu_custom_call.1} parent=1 // pred_check
      _
    $region23: #{tpu_custom_call.1} parent=1 // pred_check_branch
      %50 = sbr.rel (0) target = $region25
    $region24: #{tpu_custom_call.1} parent=1 // pred_region
      %51 = dma.done [#allocation3], 256
    $region25: #{tpu_custom_call.1} parent=1 // pred_fallthru
      _
    // Predicated region
    $region26: #{tpu_custom_call.1} parent=1 // pred_check
      _
    $region27: #{tpu_custom_call.1} parent=1 // pred_check_branch
      %53 = sbr.rel (0) target = $region29
    $region28: #{tpu_custom_call.1} parent=1 // pred_region
      %54 = dma.done [#allocation6], 32
    $region29: #{tpu_custom_call.1} parent=1 // pred_fallthru
      _
    // Predicated region
    $region30: #{tpu_custom_call.1} parent=1 // pred_check
      _
    $region31: #{tpu_custom_call.1} parent=1 // pred_check_branch
      %56 = sbr.rel (0) target = $region33
    $region32: #{tpu_custom_call.1} parent=1 // pred_region
      %57 = dma.done [#allocation6], 1024
    $region33: #{tpu_custom_call.1} parent=1 // pred_fallthru
      _
    %v59 = vld [vmem:[#allocation2] sm:$0xff]
    %v60 = vld [vmem:[#allocation2 + $0x8] sm:$0xff]
    %v61 = vld [vmem:[#allocation7] sm:$0xff]
    %v62 = vld [vmem:[#allocation7 + $0x8] sm:$0xff]
    %v63 = vld [vmem:[#allocation7 + $0x10] sm:$0xff]
    %v64 = vld [vmem:[#allocation7 + $0x18] sm:$0xff]
    %v65 = vld [vmem:[#allocation7 + $0x20] sm:$0x1]
    %v66 = vld [vmem:[#allocation7 + $0x28] sm:$0x1]
    %v67 = vld [vmem:[#allocation7 + $0x30] sm:$0x1]
    %v68 = vld [vmem:[#allocation7 + $0x38] sm:$0x1]
    %v69 = vld [vmem:[%s4] sm:$0xf]
    %v70 = vld [vmem:[#allocation5] sm:$0x3]
    %v72 = vcombine.high %v60, %v60
    %73 = vrot.lane.b32.xlu0 %v72, 17
    %v74 = vpop.permute.xlu0 %73
    %v77 = vcombine.high %v59, %v59
    %78 = vrot.lane.b32.xlu0 %v59, 17
    %v79 = vpop.permute.xlu0 %78
    %80 = vrot.lane.b32.xlu0 %v77, 17
    %v81 = vpop.permute.xlu0 %80
    %82 = vrot.lane.b32.xlu0 %v60, 17
    %v83 = vpop.permute.xlu0 %82
    %vm84 = vcmask 138240
    %v85 = vsel %vm84, %v79, %v81
    %v86 = vsel %vm84, %v81, %v83
    %v87 = vsel %vm84, %v83, %v74
    %v92 = vsel %vm84, %v74, %v79
    %v93 = vlaneseq
    %v94 = vshrl.u32 %v93, 7
    %v95 = vsub.s32 0, %v94
    %v96 = vrot.slane %v61, %v95
    %v97 = vlaneseq
    %v98 = vshrl.u32 %v97, 7
    %v99 = vsub.s32 0, %v98
    %v100 = vrot.slane %v62, %v99
    %v101 = vlaneseq
    %v102 = vshrl.u32 %v101, 7
    %v103 = vsub.s32 0, %v102
    %v104 = vrot.slane %v63, %v103
    %v105 = vlaneseq
    %v106 = vshrl.u32 %v105, 7
    %v107 = vsub.s32 0, %v106
    %v108 = vrot.slane %v64, %v107
    %v109 = vmul.f32 %v92, %v96
    %v110 = vmul.f32 %v85, %v100
    %v111 = vmul.f32 %v86, %v104
    %v112 = vmul.f32 %v87, %v108
    %113 = vrot.lane.b32.xlu0 %v72, 16
    %v114 = vpop.permute.xlu0 %113
    %116 = vrot.lane.b32.xlu0 %v59, 16
    %v117 = vpop.permute.xlu0 %116
    %118 = vrot.lane.b32.xlu0 %v77, 16
    %v119 = vpop.permute.xlu0 %118
    %120 = vrot.lane.b32.xlu0 %v60, 16
    %v121 = vpop.permute.xlu0 %120
    %vm122 = vcmask 130048
    %v123 = vsel %vm122, %v117, %v119
    %v124 = vsel %vm122, %v119, %v121
    %v125 = vsel %vm122, %v121, %v114
    %v130 = vsel %vm122, %v114, %v117
    %v131 = vlaneseq
    %v132 = vshrl.u32 %v131, 7
    %v133 = vsub.s32 1, %v132
    %v134 = vrot.slane %v61, %v133
    %v135 = vlaneseq
    %v136 = vshrl.u32 %v135, 7
    %v137 = vsub.s32 1, %v136
    %v138 = vrot.slane %v62, %v137
    %v139 = vlaneseq
    %v140 = vshrl.u32 %v139, 7
    %v141 = vsub.s32 1, %v140
    %v142 = vrot.slane %v63, %v141
    %v143 = vlaneseq
    %v144 = vshrl.u32 %v143, 7
    %v145 = vsub.s32 1, %v144
    %v146 = vrot.slane %v64, %v145
    %v147 = vmul.f32 %v130, %v134
    %v148 = vmul.f32 %v123, %v138
    %v149 = vmul.f32 %v124, %v142
    %v150 = vmul.f32 %v125, %v146
    %151 = vrot.lane.b32.xlu0 %v72, 15
    %v152 = vpop.permute.xlu0 %151
    %154 = vrot.lane.b32.xlu0 %v59, 15
    %v155 = vpop.permute.xlu0 %154
    %156 = vrot.lane.b32.xlu0 %v77, 15
    %v157 = vpop.permute.xlu0 %156
    %158 = vrot.lane.b32.xlu0 %v60, 15
    %v159 = vpop.permute.xlu0 %158
    %vm160 = vcmask 121856
    %v161 = vsel %vm160, %v155, %v157
    %v162 = vsel %vm160, %v157, %v159
    %v163 = vsel %vm160, %v159, %v152
    %v168 = vsel %vm160, %v152, %v155
    %v169 = vlaneseq
    %v170 = vshrl.u32 %v169, 7
    %v171 = vsub.s32 2, %v170
    %v172 = vrot.slane %v61, %v171
    %v173 = vlaneseq
    %v174 = vshrl.u32 %v173, 7
    %v175 = vsub.s32 2, %v174
    %v176 = vrot.slane %v62, %v175
    %v177 = vlaneseq
    %v178 = vshrl.u32 %v177, 7
    %v179 = vsub.s32 2, %v178
    %v180 = vrot.slane %v63, %v179
    %v181 = vlaneseq
    %v182 = vshrl.u32 %v181, 7
    %v183 = vsub.s32 2, %v182
    %v184 = vrot.slane %v64, %v183
    %v185 = vmul.f32 %v168, %v172
    %v186 = vmul.f32 %v161, %v176
    %v187 = vmul.f32 %v162, %v180
    %v188 = vmul.f32 %v163, %v184
    %189 = vrot.lane.b32.xlu0 %v72, 1
    %v190 = vpop.permute.xlu0 %189
    %192 = vrot.lane.b32.xlu0 %v59, 1
    %v193 = vpop.permute.xlu0 %192
    %194 = vrot.lane.b32.xlu0 %v77, 1
    %v195 = vpop.permute.xlu0 %194
    %196 = vrot.lane.b32.xlu0 %v60, 1
    %v197 = vpop.permute.xlu0 %196
    %vm198 = vcmask 7168
    %v199 = vsel %vm198, %v193, %v195
    %v200 = vsel %vm198, %v195, %v197
    %v201 = vsel %vm198, %v197, %v190
    %v206 = vsel %vm198, %v190, %v193
    %v207 = vlaneseq
    %v208 = vshrl.u32 %v207, 7
    %v209 = vsub.s32 3, %v208
    %v210 = vrot.slane %v61, %v209
    %v211 = vlaneseq
    %v212 = vshrl.u32 %v211, 7
    %v213 = vsub.s32 3, %v212
    %v214 = vrot.slane %v62, %v213
    %v215 = vlaneseq
    %v216 = vshrl.u32 %v215, 7
    %v217 = vsub.s32 3, %v216
    %v218 = vrot.slane %v63, %v217
    %v219 = vlaneseq
    %v220 = vshrl.u32 %v219, 7
    %v221 = vsub.s32 3, %v220
    %v222 = vrot.slane %v64, %v221
    %v223 = vmul.f32 %v206, %v210
    %v224 = vmul.f32 %v199, %v214
    %v225 = vmul.f32 %v200, %v218
    %v226 = vmul.f32 %v201, %v222
    %227 = vrot.lane.b32.xlu0 %v59, 127
    %v228 = vpop.permute.xlu0 %227
    %229 = vrot.lane.b32.xlu0 %v77, 127
    %v230 = vpop.permute.xlu0 %229
    %231 = vrot.lane.b32.xlu0 %v60, 127
    %v232 = vpop.permute.xlu0 %231
    %233 = vrot.lane.b32.xlu0 %v72, 127
    %v234 = vpop.permute.xlu0 %233
    %vm235 = vcmask 1039360
    %v236 = vsel %vm235, %v228, %v230
    %v237 = vsel %vm235, %v230, %v232
    %v238 = vsel %vm235, %v232, %v234
    %v244 = vsel %vm235, %v234, %v228
    %v245 = vlaneseq
    %v246 = vshrl.u32 %v245, 7
    %v247 = vsub.s32 5, %v246
    %v248 = vrot.slane %v61, %v247
    %v249 = vlaneseq
    %v250 = vshrl.u32 %v249, 7
    %v251 = vsub.s32 5, %v250
    %v252 = vrot.slane %v62, %v251
    %v253 = vlaneseq
    %v254 = vshrl.u32 %v253, 7
    %v255 = vsub.s32 5, %v254
    %v256 = vrot.slane %v63, %v255
    %v257 = vlaneseq
    %v258 = vshrl.u32 %v257, 7
    %v259 = vsub.s32 5, %v258
    %v260 = vrot.slane %v64, %v259
    %v261 = vmul.f32 %v236, %v248
    %v262 = vmul.f32 %v237, %v252
    %v263 = vmul.f32 %v238, %v256
    %v264 = vmul.f32 %v244, %v260
    %265 = vrot.lane.b32.xlu0 %v59, 113
    %v266 = vpop.permute.xlu0 %265
    %267 = vrot.lane.b32.xlu0 %v77, 113
    %v268 = vpop.permute.xlu0 %267
    %269 = vrot.lane.b32.xlu0 %v60, 113
    %v270 = vpop.permute.xlu0 %269
    %271 = vrot.lane.b32.xlu0 %v72, 113
    %v272 = vpop.permute.xlu0 %271
    %vm273 = vcmask 924672
    %v274 = vsel %vm273, %v266, %v268
    %v275 = vsel %vm273, %v268, %v270
    %v276 = vsel %vm273, %v270, %v272
    %v282 = vsel %vm273, %v272, %v266
    %v283 = vlaneseq
    %v284 = vshrl.u32 %v283, 7
    %v285 = vsub.s32 6, %v284
    %v286 = vrot.slane %v61, %v285
    %v287 = vlaneseq
    %v288 = vshrl.u32 %v287, 7
    %v289 = vsub.s32 6, %v288
    %v290 = vrot.slane %v62, %v289
    %v291 = vlaneseq
    %v292 = vshrl.u32 %v291, 7
    %v293 = vsub.s32 6, %v292
    %v294 = vrot.slane %v63, %v293
    %v295 = vlaneseq
    %v296 = vshrl.u32 %v295, 7
    %v297 = vsub.s32 6, %v296
    %v298 = vrot.slane %v64, %v297
    %v299 = vmul.f32 %v274, %v286
    %v300 = vmul.f32 %v275, %v290
    %v301 = vmul.f32 %v276, %v294
    %v302 = vmul.f32 %v282, %v298
    %303 = vrot.lane.b32.xlu0 %v59, 112
    %v304 = vpop.permute.xlu0 %303
    %305 = vrot.lane.b32.xlu0 %v77, 112
    %v306 = vpop.permute.xlu0 %305
    %307 = vrot.lane.b32.xlu0 %v60, 112
    %v308 = vpop.permute.xlu0 %307
    %309 = vrot.lane.b32.xlu0 %v72, 112
    %v310 = vpop.permute.xlu0 %309
    %vm311 = vcmask 916480
    %v312 = vsel %vm311, %v304, %v306
    %v313 = vsel %vm311, %v306, %v308
    %v314 = vsel %vm311, %v308, %v310
    %v320 = vsel %vm311, %v310, %v304
    %v321 = vlaneseq
    %v322 = vshrl.u32 %v321, 7
    %v323 = vsub.s32 7, %v322
    %v324 = vrot.slane %v61, %v323
    %v325 = vlaneseq
    %v326 = vshrl.u32 %v325, 7
    %v327 = vsub.s32 7, %v326
    %v328 = vrot.slane %v62, %v327
    %v329 = vlaneseq
    %v330 = vshrl.u32 %v329, 7
    %v331 = vsub.s32 7, %v330
    %v332 = vrot.slane %v63, %v331
    %v333 = vlaneseq
    %v334 = vshrl.u32 %v333, 7
    %v335 = vsub.s32 7, %v334
    %v336 = vrot.slane %v64, %v335
    %v337 = vmul.f32 %v312, %v324
    %v338 = vmul.f32 %v313, %v328
    %v339 = vmul.f32 %v314, %v332
    %v340 = vmul.f32 %v320, %v336
    %341 = vrot.lane.b32.xlu0 %v59, 111
    %v342 = vpop.permute.xlu0 %341
    %343 = vrot.lane.b32.xlu0 %v77, 111
    %v344 = vpop.permute.xlu0 %343
    %345 = vrot.lane.b32.xlu0 %v60, 111
    %v346 = vpop.permute.xlu0 %345
    %347 = vrot.lane.b32.xlu0 %v72, 111
    %v348 = vpop.permute.xlu0 %347
    %vm349 = vcmask 908288
    %v350 = vsel %vm349, %v342, %v344
    %v351 = vsel %vm349, %v344, %v346
    %v352 = vsel %vm349, %v346, %v348
    %v358 = vsel %vm349, %v348, %v342
    %v359 = vlaneseq
    %v360 = vshrl.u32 %v359, 7
    %v361 = vsub.s32 0, %v360
    %v362 = vrot.slane %v65, %v361
    %v363 = vlaneseq
    %v364 = vshrl.u32 %v363, 7
    %v365 = vsub.s32 0, %v364
    %v366 = vrot.slane %v66, %v365
    %v367 = vlaneseq
    %v368 = vshrl.u32 %v367, 7
    %v369 = vsub.s32 0, %v368
    %v370 = vrot.slane %v67, %v369
    %v371 = vlaneseq
    %v372 = vshrl.u32 %v371, 7
    %v373 = vsub.s32 0, %v372
    %v374 = vrot.slane %v68, %v373
    %v375 = vmul.f32 %v350, %v362
    %v376 = vmul.f32 %v351, %v366
    %v377 = vmul.f32 %v352, %v370
    %v378 = vmul.f32 %v358, %v374
    %v383 = vrot.slane %v147, 4
    %v384 = vrot.slane %v148, 4
    %v385 = vrot.slane %v149, 4
    %v386 = vrot.slane %v150, 4
    %v395 = vrot.slane %v223, 4
    %v396 = vrot.slane %v224, 4
    %v397 = vrot.slane %v225, 4
    %v398 = vrot.slane %v226, 4
    %v409 = vrot.slane %v261, 4
    %v410 = vrot.slane %v262, 4
    %v411 = vrot.slane %v263, 4
    %v412 = vrot.slane %v264, 4
    %v421 = vrot.slane %v337, 4
    %v422 = vrot.slane %v338, 4
    %v423 = vrot.slane %v339, 4
    %v424 = vrot.slane %v340, 4
    %vm429 = vcmask 1043456
    %v430 = vsel %vm429, %v109, %v383
    %v431 = vsel %vm429, %v110, %v384
    %v432 = vsel %vm429, %v111, %v385
    %v433 = vsel %vm429, %v112, %v386
    %v434 = vsel %vm429, %v185, %v395
    %v435 = vsel %vm429, %v186, %v396
    %v436 = vsel %vm429, %v187, %v397
    %v437 = vsel %vm429, %v188, %v398
    %v438 = vsel %vm429, %v59, %v409
    %v439 = vsel %vm429, %v77, %v410
    %v440 = vsel %vm429, %v60, %v411
    %v441 = vsel %vm429, %v72, %v412
    %v442 = vsel %vm429, %v299, %v421
    %v443 = vsel %vm429, %v300, %v422
    %v444 = vsel %vm429, %v301, %v423
    %v445 = vsel %vm429, %v302, %v424
    %v446 = vpack.c.bf16 %v434, %v430
    %v447 = vpack.c.bf16 %v435, %v431
    %v448 = vpack.c.bf16 %v436, %v432
    %v449 = vpack.c.bf16 %v437, %v433
    %v450 = vpack.c.bf16 %v442, %v438
    %v451 = vpack.c.bf16 %v443, %v439
    %v452 = vpack.c.bf16 %v444, %v440
    %v453 = vpack.c.bf16 %v445, %v441
    %v454 = vpack.c.bf16 %v375, %v375
    %v455 = vpack.c.bf16 %v376, %v376
    %v456 = vpack.c.bf16 %v377, %v377
    %v457 = vpack.c.bf16 %v378, %v378
    %vm458 = vcmask 293888
    %v460 = vsel %vm458, %v70, 0
    %vm462 = vcmask 1041408
    %v464 = vsel %vm462, %v454, 0
    %v467 = vsel %vm462, %v455, 0
    %v470 = vsel %vm462, %v456, 0
    %v473 = vsel %vm462, %v457, 0
    %475 = vmatprep.subr.bf16.mxu0 0
    %476 = vmatpush1.bf16.msra.mxu0 0
    %477 = vmatprep.subr.bf16.mxu0 0
    %478 = vmatpush1.bf16.msra.mxu0 0
    %479 = vmatprep.subr.bf16.mxu0 0
    %480 = vmatpush1.bf16.msra.mxu0 0
    %481 = vmatprep.subr.bf16.mxu0 0
    %482 = vmatpush1.bf16.msra.mxu0 0
    %483 = vmatprep.subr.bf16.mxu0 0
    %484 = vmatpush1.bf16.msra.mxu0 0
    %485 = vmatprep.subr.bf16.mxu0 %v467
    %486 = vmatpush1.bf16.msra.mxu0 %v464
    %487 = vmatprep.subr.bf16.mxu0 %v451
    %488 = vmatpush1.bf16.msra.mxu0 %v450
    %489 = vmatprep.subr.bf16.mxu0 %v447
    %490 = vmatpush1.bf16.msra.mxu0 %v446
    %491 = vmatprep.subr.bf16.mxu0 0
    %492 = vmatpush2.bf16.msra.mxu0 0
    %493 = vmatprep.subr.bf16.mxu0 0
    %494 = vmatpush2.bf16.msra.mxu0 0
    %495 = vmatprep.subr.bf16.mxu0 0
    %496 = vmatpush2.bf16.msra.mxu0 0
    %497 = vmatprep.subr.bf16.mxu0 0
    %498 = vmatpush2.bf16.msra.mxu0 0
    %499 = vmatprep.subr.bf16.mxu0 0
    %500 = vmatpush2.bf16.msra.mxu0 0
    %501 = vmatprep.subr.bf16.mxu0 0
    %502 = vmatpush2.bf16.msra.mxu0 0
    %503 = vmatprep.subr.bf16.mxu0 0
    %504 = vmatpush2.bf16.msra.mxu0 0
    %505 = vmatprep.subr.bf16.mxu0 0
    %506 = vmatpush2.bf16.msra.mxu0 0
    %507 = vmatprep.mubr.bf16.mxu0 0
    %508 = vmatmul.mubr.bf16.gmra.mxu0 %v460
    %v509 = vpop.f32.mrf.mxu0
    %v510 = vadd.f32 0.0, %v509
    %v511 = vpop.f32.mrf.mxu0
    %v512 = vadd.f32 0.0, %v511
    %v513 = vpop.f32.mrf.mxu0
    %v514 = vpop.f32.mrf.mxu0
    %515 = vdwg.mxu0
    %516 = vmatprep.subr.bf16.mxu0 0
    %517 = vmatpush1.bf16.msra.mxu0 0
    %518 = vmatprep.subr.bf16.mxu0 0
    %519 = vmatpush1.bf16.msra.mxu0 0
    %520 = vmatprep.subr.bf16.mxu0 0
    %521 = vmatpush1.bf16.msra.mxu0 0
    %522 = vmatprep.subr.bf16.mxu0 0
    %523 = vmatpush1.bf16.msra.mxu0 0
    %524 = vmatprep.subr.bf16.mxu0 0
    %525 = vmatpush1.bf16.msra.mxu0 0
    %526 = vmatprep.subr.bf16.mxu0 %v473
    %527 = vmatpush1.bf16.msra.mxu0 %v470
    %528 = vmatprep.subr.bf16.mxu0 %v453
    %529 = vmatpush1.bf16.msra.mxu0 %v452
    %530 = vmatprep.subr.bf16.mxu0 %v449
    %531 = vmatpush1.bf16.msra.mxu0 %v448
    %532 = vmatprep.subr.bf16.mxu0 0
    %533 = vmatpush2.bf16.msra.mxu0 0
    %534 = vmatprep.subr.bf16.mxu0 0
    %535 = vmatpush2.bf16.msra.mxu0 0
    %536 = vmatprep.subr.bf16.mxu0 0
    %537 = vmatpush2.bf16.msra.mxu0 0
    %538 = vmatprep.subr.bf16.mxu0 0
    %539 = vmatpush2.bf16.msra.mxu0 0
    %540 = vmatprep.subr.bf16.mxu0 0
    %541 = vmatpush2.bf16.msra.mxu0 0
    %542 = vmatprep.subr.bf16.mxu0 0
    %543 = vmatpush2.bf16.msra.mxu0 0
    %544 = vmatprep.subr.bf16.mxu0 0
    %545 = vmatpush2.bf16.msra.mxu0 0
    %546 = vmatprep.subr.bf16.mxu0 0
    %547 = vmatpush2.bf16.msra.mxu0 0
    %548 = vmatprep.mubr.bf16.mxu0 0
    %549 = vmatmul.mubr.bf16.gmra.mxu0 %v460
    %v550 = vpop.f32.mrf.mxu0
    %v551 = vadd.f32 0.0, %v550
    %v552 = vpop.f32.mrf.mxu0
    %v553 = vadd.f32 0.0, %v552
    %v554 = vpop.f32.mrf.mxu0
    %v555 = vpop.f32.mrf.mxu0
    %556 = vdwg.mxu0
    %v557 = vsel %vm429, %v510, 0.0
    %v558 = vsel %vm429, %v512, 0.0
    %v559 = vadd.f32 %v557, %v558
    %v560 = vsel %vm429, %v551, 0.0
    %v561 = vadd.f32 %v559, %v560
    %v562 = vsel %vm429, %v553, 0.0
    %v563 = vadd.f32 %v561, %v562
    %564 = vadd.xlane.f32.xlu0 %v563
    %v565 = vpop.xlane.xlu0 %564
    %v566 = vmul.f32 %v565, 0.001953125
    %v567 = vsub.f32 %v510, %v566
    %v568 = vsub.f32 %v512, %v566
    %v569 = vsub.f32 %v551, %v566
    %v570 = vsub.f32 %v553, %v566
    %v571 = vmul.f32 %v567, %v567
    %v572 = vmul.f32 %v568, %v568
    %v573 = vmul.f32 %v569, %v569
    %v574 = vmul.f32 %v570, %v570
    %v575 = vsel %vm429, %v571, 0.0
    %v576 = vsel %vm429, %v572, 0.0
    %v577 = vadd.f32 %v575, %v576
    %v578 = vsel %vm429, %v573, 0.0
    %v579 = vadd.f32 %v577, %v578
    %v580 = vsel %vm429, %v574, 0.0
    %v581 = vadd.f32 %v579, %v580
    %582 = vadd.xlane.f32.xlu0 %v581
    %v583 = vpop.xlane.xlu0 %582
    %v584 = vmul.f32 %v583, 0.001953125
    %v585 = vadd.f32 %v584, 1e-05
    %v586 = vrsqrt.pop %v585
    %v587 = vmul.f32 %v567, %v586
    %v588 = vmul.f32 %v568, %v586
    %v589 = vmul.f32 %v569, %v586
    %v590 = vmul.f32 %v570, %v586
    %592 = vset.pattern.permute.xlu0 0
    %593 = vperm.xlu0 %592, %v69
    %v594 = vpop.permute.xlu0 %593
    %v596 = vmul.f32 %v587, %v594
    %v597 = vmul.f32 %v588, %v594
    %v598 = vmul.f32 %v589, %v594
    %v599 = vmul.f32 %v590, %v594
    %600 = vset.pattern.permute.xlu0 1
    %601 = vperm.xlu0 %600, %v69
    %v602 = vpop.permute.xlu0 %601
    %v604 = vadd.f32 %v596, %v602
    %v605 = vadd.f32 %v597, %v602
    %v606 = vadd.f32 %v598, %v602
    %v607 = vadd.f32 %v599, %v602
    %v608 = vmax.f32 %v604, 0.0
    %v609 = vmax.f32 %v605, 0.0
    %v610 = vmax.f32 %v606, 0.0
    %v611 = vmax.f32 %v607, 0.0
    %v612 = vld [vmem:[%s2] sm:$0x3]
    %614 = vrot.lane.b32.xlu0 %v611, 17
    %v615 = vpop.permute.xlu0 %614
    %620 = vrot.lane.b32.xlu0 %v608, 17
    %v621 = vpop.permute.xlu0 %620
    %622 = vrot.lane.b32.xlu0 %v609, 17
    %v623 = vpop.permute.xlu0 %622
    %624 = vrot.lane.b32.xlu0 %v610, 17
    %v625 = vpop.permute.xlu0 %624
    %v626 = vsel %vm84, %v621, %v623
    %v627 = vsel %vm84, %v623, %v625
    %v628 = vsel %vm84, %v625, %v615
    %v633 = vsel %vm84, %v615, %v621
    %v634 = vmul.f32 %v633, %v96
    %v635 = vmul.f32 %v626, %v100
    %v636 = vmul.f32 %v627, %v104
    %v637 = vmul.f32 %v628, %v108
    %638 = vrot.lane.b32.xlu0 %v611, 16
    %v639 = vpop.permute.xlu0 %638
    %641 = vrot.lane.b32.xlu0 %v608, 16
    %v642 = vpop.permute.xlu0 %641
    %643 = vrot.lane.b32.xlu0 %v609, 16
    %v644 = vpop.permute.xlu0 %643
    %645 = vrot.lane.b32.xlu0 %v610, 16
    %v646 = vpop.permute.xlu0 %645
    %v647 = vsel %vm122, %v642, %v644
    %v648 = vsel %vm122, %v644, %v646
    %v649 = vsel %vm122, %v646, %v639
    %v654 = vsel %vm122, %v639, %v642
    %v655 = vmul.f32 %v654, %v134
    %v656 = vmul.f32 %v647, %v138
    %v657 = vmul.f32 %v648, %v142
    %v658 = vmul.f32 %v649, %v146
    %659 = vrot.lane.b32.xlu0 %v611, 15
    %v660 = vpop.permute.xlu0 %659
    %662 = vrot.lane.b32.xlu0 %v608, 15
    %v663 = vpop.permute.xlu0 %662
    %664 = vrot.lane.b32.xlu0 %v609, 15
    %v665 = vpop.permute.xlu0 %664
    %666 = vrot.lane.b32.xlu0 %v610, 15
    %v667 = vpop.permute.xlu0 %666
    %v668 = vsel %vm160, %v663, %v665
    %v669 = vsel %vm160, %v665, %v667
    %v670 = vsel %vm160, %v667, %v660
    %v675 = vsel %vm160, %v660, %v663
    %v676 = vmul.f32 %v675, %v172
    %v677 = vmul.f32 %v668, %v176
    %v678 = vmul.f32 %v669, %v180
    %v679 = vmul.f32 %v670, %v184
    %680 = vrot.lane.b32.xlu0 %v611, 1
    %v681 = vpop.permute.xlu0 %680
    %683 = vrot.lane.b32.xlu0 %v608, 1
    %v684 = vpop.permute.xlu0 %683
    %685 = vrot.lane.b32.xlu0 %v609, 1
    %v686 = vpop.permute.xlu0 %685
    %687 = vrot.lane.b32.xlu0 %v610, 1
    %v688 = vpop.permute.xlu0 %687
    %v689 = vsel %vm198, %v684, %v686
    %v690 = vsel %vm198, %v686, %v688
    %v691 = vsel %vm198, %v688, %v681
    %v696 = vsel %vm198, %v681, %v684
    %v697 = vmul.f32 %v696, %v210
    %v698 = vmul.f32 %v689, %v214
    %v699 = vmul.f32 %v690, %v218
    %v700 = vmul.f32 %v691, %v222
    %701 = vrot.lane.b32.xlu0 %v608, 127
    %v702 = vpop.permute.xlu0 %701
    %703 = vrot.lane.b32.xlu0 %v609, 127
    %v704 = vpop.permute.xlu0 %703
    %705 = vrot.lane.b32.xlu0 %v610, 127
    %v706 = vpop.permute.xlu0 %705
    %707 = vrot.lane.b32.xlu0 %v611, 127
    %v708 = vpop.permute.xlu0 %707
    %v709 = vsel %vm235, %v702, %v704
    %v710 = vsel %vm235, %v704, %v706
    %v711 = vsel %vm235, %v706, %v708
    %v717 = vsel %vm235, %v708, %v702
    %v718 = vmul.f32 %v709, %v248
    %v719 = vmul.f32 %v710, %v252
    %v720 = vmul.f32 %v711, %v256
    %v721 = vmul.f32 %v717, %v260
    %722 = vrot.lane.b32.xlu0 %v608, 113
    %v723 = vpop.permute.xlu0 %722
    %724 = vrot.lane.b32.xlu0 %v609, 113
    %v725 = vpop.permute.xlu0 %724
    %726 = vrot.lane.b32.xlu0 %v610, 113
    %v727 = vpop.permute.xlu0 %726
    %728 = vrot.lane.b32.xlu0 %v611, 113
    %v729 = vpop.permute.xlu0 %728
    %v730 = vsel %vm273, %v723, %v725
    %v731 = vsel %vm273, %v725, %v727
    %v732 = vsel %vm273, %v727, %v729
    %v738 = vsel %vm273, %v729, %v723
    %v739 = vmul.f32 %v730, %v286
    %v740 = vmul.f32 %v731, %v290
    %v741 = vmul.f32 %v732, %v294
    %v742 = vmul.f32 %v738, %v298
    %743 = vrot.lane.b32.xlu0 %v608, 112
    %v744 = vpop.permute.xlu0 %743
    %745 = vrot.lane.b32.xlu0 %v609, 112
    %v746 = vpop.permute.xlu0 %745
    %747 = vrot.lane.b32.xlu0 %v610, 112
    %v748 = vpop.permute.xlu0 %747
    %749 = vrot.lane.b32.xlu0 %v611, 112
    %v750 = vpop.permute.xlu0 %749
    %v751 = vsel %vm311, %v744, %v746
    %v752 = vsel %vm311, %v746, %v748
    %v753 = vsel %vm311, %v748, %v750
    %v759 = vsel %vm311, %v750, %v744
    %v760 = vmul.f32 %v751, %v324
    %v761 = vmul.f32 %v752, %v328
    %v762 = vmul.f32 %v753, %v332
    %v763 = vmul.f32 %v759, %v336
    %764 = vrot.lane.b32.xlu0 %v608, 111
    %v765 = vpop.permute.xlu0 %764
    %766 = vrot.lane.b32.xlu0 %v609, 111
    %v767 = vpop.permute.xlu0 %766
    %768 = vrot.lane.b32.xlu0 %v610, 111
    %v769 = vpop.permute.xlu0 %768
    %770 = vrot.lane.b32.xlu0 %v611, 111
    %v771 = vpop.permute.xlu0 %770
    %v772 = vsel %vm349, %v765, %v767
    %v773 = vsel %vm349, %v767, %v769
    %v774 = vsel %vm349, %v769, %v771
    %v780 = vsel %vm349, %v771, %v765
    %v781 = vmul.f32 %v772, %v362
    %v782 = vmul.f32 %v773, %v366
    %v783 = vmul.f32 %v774, %v370
    %v784 = vmul.f32 %v780, %v374
    %v789 = vrot.slane %v655, 4
    %v790 = vrot.slane %v656, 4
    %v791 = vrot.slane %v657, 4
    %v792 = vrot.slane %v658, 4
    %v801 = vrot.slane %v697, 4
    %v802 = vrot.slane %v698, 4
    %v803 = vrot.slane %v699, 4
    %v804 = vrot.slane %v700, 4
    %v813 = vrot.slane %v718, 4
    %v814 = vrot.slane %v719, 4
    %v815 = vrot.slane %v720, 4
    %v816 = vrot.slane %v721, 4
    %v825 = vrot.slane %v760, 4
    %v826 = vrot.slane %v761, 4
    %v827 = vrot.slane %v762, 4
    %v828 = vrot.slane %v763, 4
    %v833 = vsel %vm429, %v634, %v789
    %v834 = vsel %vm429, %v635, %v790
    %v835 = vsel %vm429, %v636, %v791
    %v836 = vsel %vm429, %v637, %v792
    %v837 = vsel %vm429, %v676, %v801
    %v838 = vsel %vm429, %v677, %v802
    %v839 = vsel %vm429, %v678, %v803
    %v840 = vsel %vm429, %v679, %v804
    %v841 = vsel %vm429, %v608, %v813
    %v842 = vsel %vm429, %v609, %v814
    %v843 = vsel %vm429, %v610, %v815
    %v844 = vsel %vm429, %v611, %v816
    %v845 = vsel %vm429, %v739, %v825
    %v846 = vsel %vm429, %v740, %v826
    %v847 = vsel %vm429, %v741, %v827
    %v848 = vsel %vm429, %v742, %v828
    %v849 = vpack.c.bf16 %v837, %v833
    %v850 = vpack.c.bf16 %v838, %v834
    %v851 = vpack.c.bf16 %v839, %v835
    %v852 = vpack.c.bf16 %v840, %v836
    %v853 = vpack.c.bf16 %v845, %v841
    %v854 = vpack.c.bf16 %v846, %v842
    %v855 = vpack.c.bf16 %v847, %v843
    %v856 = vpack.c.bf16 %v848, %v844
    %v857 = vpack.c.bf16 %v781, %v781
    %v858 = vpack.c.bf16 %v782, %v782
    %v859 = vpack.c.bf16 %v783, %v783
    %v860 = vpack.c.bf16 %v784, %v784
    %v862 = vsel %vm458, %v612, 0
    %v865 = vsel %vm462, %v857, 0
    %v868 = vsel %vm462, %v858, 0
    %v871 = vsel %vm462, %v859, 0
    %v874 = vsel %vm462, %v860, 0
    %876 = vmatprep.subr.bf16.mxu0 0
    %877 = vmatpush1.bf16.msra.mxu0 0
    %878 = vmatprep.subr.bf16.mxu0 0
    %879 = vmatpush1.bf16.msra.mxu0 0
    %880 = vmatprep.subr.bf16.mxu0 0
    %881 = vmatpush1.bf16.msra.mxu0 0
    %882 = vmatprep.subr.bf16.mxu0 0
    %883 = vmatpush1.bf16.msra.mxu0 0
    %884 = vmatprep.subr.bf16.mxu0 0
    %885 = vmatpush1.bf16.msra.mxu0 0
    %886 = vmatprep.subr.bf16.mxu0 %v868
    %887 = vmatpush1.bf16.msra.mxu0 %v865
    %888 = vmatprep.subr.bf16.mxu0 %v854
    %889 = vmatpush1.bf16.msra.mxu0 %v853
    %890 = vmatprep.subr.bf16.mxu0 %v850
    %891 = vmatpush1.bf16.msra.mxu0 %v849
    %892 = vmatprep.subr.bf16.mxu0 0
    %893 = vmatpush2.bf16.msra.mxu0 0
    %894 = vmatprep.subr.bf16.mxu0 0
    %895 = vmatpush2.bf16.msra.mxu0 0
    %896 = vmatprep.subr.bf16.mxu0 0
    %897 = vmatpush2.bf16.msra.mxu0 0
    %898 = vmatprep.subr.bf16.mxu0 0
    %899 = vmatpush2.bf16.msra.mxu0 0
    %900 = vmatprep.subr.bf16.mxu0 0
    %901 = vmatpush2.bf16.msra.mxu0 0
    %902 = vmatprep.subr.bf16.mxu0 0
    %903 = vmatpush2.bf16.msra.mxu0 0
    %904 = vmatprep.subr.bf16.mxu0 0
    %905 = vmatpush2.bf16.msra.mxu0 0
    %906 = vmatprep.subr.bf16.mxu0 0
    %907 = vmatpush2.bf16.msra.mxu0 0
    %908 = vmatprep.mubr.bf16.mxu0 0
    %909 = vmatmul.mubr.bf16.gmra.mxu0 %v862
    %v910 = vpop.f32.mrf.mxu0
    %v911 = vadd.f32 0.0, %v910
    %v912 = vpop.f32.mrf.mxu0
    %v913 = vadd.f32 0.0, %v912
    %v914 = vpop.f32.mrf.mxu0
    %v915 = vpop.f32.mrf.mxu0
    %916 = vdwg.mxu0
    %917 = vmatprep.subr.bf16.mxu0 0
    %918 = vmatpush1.bf16.msra.mxu0 0
    %919 = vmatprep.subr.bf16.mxu0 0
    %920 = vmatpush1.bf16.msra.mxu0 0
    %921 = vmatprep.subr.bf16.mxu0 0
    %922 = vmatpush1.bf16.msra.mxu0 0
    %923 = vmatprep.subr.bf16.mxu0 0
    %924 = vmatpush1.bf16.msra.mxu0 0
    %925 = vmatprep.subr.bf16.mxu0 0
    %926 = vmatpush1.bf16.msra.mxu0 0
    %927 = vmatprep.subr.bf16.mxu0 %v874
    %928 = vmatpush1.bf16.msra.mxu0 %v871
    %929 = vmatprep.subr.bf16.mxu0 %v856
    %930 = vmatpush1.bf16.msra.mxu0 %v855
    %931 = vmatprep.subr.bf16.mxu0 %v852
    %932 = vmatpush1.bf16.msra.mxu0 %v851
    %933 = vmatprep.subr.bf16.mxu0 0
    %934 = vmatpush2.bf16.msra.mxu0 0
    %935 = vmatprep.subr.bf16.mxu0 0
    %936 = vmatpush2.bf16.msra.mxu0 0
    %937 = vmatprep.subr.bf16.mxu0 0
    %938 = vmatpush2.bf16.msra.mxu0 0
    %939 = vmatprep.subr.bf16.mxu0 0
    %940 = vmatpush2.bf16.msra.mxu0 0
    %941 = vmatprep.subr.bf16.mxu0 0
    %942 = vmatpush2.bf16.msra.mxu0 0
    %943 = vmatprep.subr.bf16.mxu0 0
    %944 = vmatpush2.bf16.msra.mxu0 0
    %945 = vmatprep.subr.bf16.mxu0 0
    %946 = vmatpush2.bf16.msra.mxu0 0
    %947 = vmatprep.subr.bf16.mxu0 0
    %948 = vmatpush2.bf16.msra.mxu0 0
    %949 = vmatprep.mubr.bf16.mxu0 0
    %950 = vmatmul.mubr.bf16.gmra.mxu0 %v862
    %v951 = vpop.f32.mrf.mxu0
    %v952 = vadd.f32 0.0, %v951
    %v953 = vpop.f32.mrf.mxu0
    %v954 = vadd.f32 0.0, %v953
    %v955 = vpop.f32.mrf.mxu0
    %v956 = vpop.f32.mrf.mxu0
    %957 = vdwg.mxu0
    %v958 = vsel %vm429, %v911, 0.0
    %v959 = vsel %vm429, %v913, 0.0
    %v960 = vadd.f32 %v958, %v959
    %v961 = vsel %vm429, %v952, 0.0
    %v962 = vadd.f32 %v960, %v961
    %v963 = vsel %vm429, %v954, 0.0
    %v964 = vadd.f32 %v962, %v963
    %965 = vadd.xlane.f32.xlu0 %v964
    %v966 = vpop.xlane.xlu0 %965
    %v967 = vmul.f32 %v966, 0.001953125
    %v968 = vsub.f32 %v911, %v967
    %v969 = vsub.f32 %v913, %v967
    %v970 = vsub.f32 %v952, %v967
    %v971 = vsub.f32 %v954, %v967
    %v972 = vmul.f32 %v968, %v968
    %v973 = vmul.f32 %v969, %v969
    %v974 = vmul.f32 %v970, %v970
    %v975 = vmul.f32 %v971, %v971
    %v976 = vsel %vm429, %v972, 0.0
    %v977 = vsel %vm429, %v973, 0.0
    %v978 = vadd.f32 %v976, %v977
    %v979 = vsel %vm429, %v974, 0.0
    %v980 = vadd.f32 %v978, %v979
    %v981 = vsel %vm429, %v975, 0.0
    %v982 = vadd.f32 %v980, %v981
    %983 = vadd.xlane.f32.xlu0 %v982
    %v984 = vpop.xlane.xlu0 %983
    %v985 = vmul.f32 %v984, 0.001953125
    %v986 = vadd.f32 %v985, 1e-05
    %v987 = vrsqrt.pop %v986
    %v988 = vmul.f32 %v968, %v987
    %v989 = vmul.f32 %v969, %v987
    %v990 = vmul.f32 %v970, %v987
    %v991 = vmul.f32 %v971, %v987
    %992 = vset.pattern.permute.xlu0 2
    %993 = vperm.xlu0 %992, %v69
    %v994 = vpop.permute.xlu0 %993
    %v996 = vmul.f32 %v988, %v994
    %v997 = vmul.f32 %v989, %v994
    %v998 = vmul.f32 %v990, %v994
    %v999 = vmul.f32 %v991, %v994
    %1000 = vset.pattern.permute.xlu0 3
    %1001 = vperm.xlu0 %1000, %v69
    %v1002 = vpop.permute.xlu0 %1001
    %v1004 = vadd.f32 %v996, %v1002
    %v1005 = vadd.f32 %v997, %v1002
    %v1006 = vadd.f32 %v998, %v1002
    %v1007 = vadd.f32 %v999, %v1002
    %v1008 = vadd.f32 %v1004, %v59
    %v1009 = vadd.f32 %v1005, %v77
    %v1010 = vadd.f32 %v1006, %v60
    %v1011 = vadd.f32 %v1007, %v72
    %v1012 = vmax.f32 %v1008, 0.0
    %v1013 = vmax.f32 %v1009, 0.0
    %v1014 = vmax.f32 %v1010, 0.0
    %v1015 = vmax.f32 %v1011, 0.0
    %v1020 = vcombine.low %v1012, %v1013
    %v1021 = vcombine.low %v1014, %v1015
    %1024 = vst [vmem:[#allocation8] sm:$0xff] %v1020
    %1025 = vst [vmem:[#allocation8 + $0x8] sm:$0xff] %v1021
    // Predicated region
    $region34: #{tpu_custom_call.1} parent=1 // pred_check
      _
    $region35: #{tpu_custom_call.1} parent=1 // pred_check_branch
      %1027 = sbr.rel (0) target = $region37
    $region36: #{tpu_custom_call.1} parent=1 // pred_region
      %s1029 = ssub.s32 256, 256
      %1030 = vsyncadd [#allocation4], %s1029
      %s1032 = sshll.u32 [#allocation8], 4
      %s1033 = int_to_ptr.vmem [resolvable:$true] %s1032
      %1035 = dma.vmem_to_hbm [thread:$0]  %s1033, 256, %s5, [#allocation4]
    $region37: #{tpu_custom_call.1} parent=1 // pred_fallthru
      _
    // Predicated region
    $region38: #{tpu_custom_call.1} parent=1 // pred_check
      _
    $region39: #{tpu_custom_call.1} parent=1 // pred_check_branch
      %1037 = sbr.rel (0) target = $region41
    $region40: #{tpu_custom_call.1} parent=1 // pred_region
      %1038 = dma.done [#allocation4], 256
    $region41: #{tpu_custom_call.1} parent=1 // pred_fallthru
      _
    %1039 = vsyncpa [#allocation3], 1
    %1040 = vsyncpa [#allocation6], 1
    %1041 = vsyncpa [#allocation4], 1

</llo_original>
